<compile_context>
chip_gen: v6e
topology: v6e:2x2x1
jax: 0.10.0
libtpu: 0.0.40
codegen_flags: <defaults>
</compile_context>

<pallas_src>
import jax
import jax.numpy as jnp
from jax.experimental import pallas as pl
from jax.experimental.pallas import tpu as pltpu


class CFG:
    in_chans = 1
    image_size = 16      # small, consistent shape for this script (224 original)
    input_size = 16      # input_size == image_size -> interpolate branch is a no-op
    target_size = 1
    batch = 16           # the per-chunk loop in the reference is per-sample anyway


# ---------------------------------------------------------------------------
# Fused kernel: norm_with_clip + in-kernel 'same' padding + 4-view TTA conv
#               (as 4 pre-rotated 3x3 kernels) + sigmoid + TTA mean.
# ---------------------------------------------------------------------------
def _fused_forward_kernel(w_ref, b_ref, x_ref, o_ref, pad_ref):
    # w_ref  : SMEM (4*C*9,)        4 rotated copies of the (C,3,3) conv kernel, flat
    # b_ref  : SMEM (1,)            conv bias
    # x_ref  : VMEM (Bc, C, H, W)   raw input batch chunk
    # o_ref  : VMEM (Bc, H, W)      TTA-averaged sigmoid output
    # pad_ref: VMEM (Bc, C, H+2, W+2) scratch holding the zero-padded normed input
    Bc, C, H, W = x_ref.shape
    n = H * W

    x = x_ref[...]

    # ---- norm_with_clip: per-(b, c) mean / unbiased std over (H, W) ----------
    s = jnp.sum(jnp.sum(x, axis=-1, keepdims=True), axis=-2, keepdims=True)
    mean = s / n
    xc = x - mean
    ss = jnp.sum(jnp.sum(xc * xc, axis=-1, keepdims=True), axis=-2, keepdims=True)
    std = jnp.sqrt(ss / (n - 1))                      # torch.std default: unbiased
    y = xc / (std + 1e-5)
    y = jnp.where(y > 5.0, (y - 5.0) * 0.001 + 5.0, y)
    y = jnp.where(y < -3.0, (y + 3.0) * 0.001 - 3.0, y)

    # ---- zero 'same' padding into VMEM scratch (halo for the 3x3 taps) -------
    pad_ref[...] = jnp.zeros_like(pad_ref)
    pad_ref[:, :, pl.ds(1, H), pl.ds(1, W)] = y

    # ---- 4 TTA views == 4 rotated 3x3 kernels (exact identity, see header) ---
    # Load each of the C*9 shifted taps once; add its contribution to all 4
    # view accumulators (keeps live vregs small even for larger C).
    accs = [jnp.zeros((Bc, H, W), jnp.float32) for _ in range(4)]
    for c in range(C):
        for di in range(3):
            for dj in range(3):
                tap = pad_ref[:, c, pl.ds(di, H), pl.ds(dj, W)]      # (Bc, H, W)
                t = (c * 3 + di) * 3 + dj
                for k in range(4):
                    accs[k] = accs[k] + w_ref[k * C * 9 + t] * tap

    out = jnp.zeros((Bc, H, W), jnp.float32)
    for k in range(4):
        logit = accs[k] + b_ref[0]
        e = jnp.exp(-logit)                                          # EUP exp
        out = out + pl.reciprocal(1.0 + e, approx=True)              # EUP rcp
    o_ref[...] = out * 0.25                                          # mean of 4 views


# ---------------------------------------------------------------------------
# Full CustomModel.forward as a single pallas_call.
# ---------------------------------------------------------------------------
def custom_model_forward(x, w, b):
    """x: (B, C, H, W); w: (target_size=1, C, 3, 3); b: (1,). Returns (B, H, W)."""
    x = x.astype(jnp.float32)
    B, C, H, W = x.shape

    # CFG.input_size == CFG.image_size -> both interpolate branches are no-ops.

    # Exact TTA identity for the linear conv head: pre-rotate the 3x3 kernels by
    # -k instead of rotating the activations by +k and un-rotating the outputs.
    w_rot = jnp.stack(
        [jnp.rot90(w[0], k=-k, axes=(-2, -1)) for k in range(4)], axis=0
    )                                                   # (4, C, 3, 3)
    w_flat = w_rot.reshape(-1).astype(jnp.float32)      # (4*C*9,)  -> SMEM
    b_flat = b.reshape(1).astype(jnp.float32)           # (1,)      -> SMEM

    # 2-way batch split keeps both TensorCores busy on v7x (megacore); on
    # v5e/v6e it is just two cheap sequential grid steps.
    G = 2 if B % 2 == 0 else 1
    Bc = B // G

    return pl.pallas_call(
        _fused_forward_kernel,
        out_shape=jax.ShapeDtypeStruct((B, H, W), jnp.float32),
        grid=(G,),
        in_specs=[
            pl.BlockSpec(memory_space=pltpu.MemorySpace.SMEM),        # rotated weights
            pl.BlockSpec(memory_space=pltpu.MemorySpace.SMEM),        # bias
            pl.BlockSpec((Bc, C, H, W), lambda i: (i, 0, 0, 0)),      # batch chunk
        ],
        out_specs=pl.BlockSpec((Bc, H, W), lambda i: (i, 0, 0)),
        scratch_shapes=[pltpu.VMEM((Bc, C, H + 2, W + 2), jnp.float32)],
        compiler_params=pltpu.CompilerParams(dimension_semantics=("parallel",)),
    )(w_flat, b_flat, x)


# ---------------------------------------------------------------------------
# Pure-JAX reference implementing the *literal* pipeline (rotate activations,
# 'same' conv, sigmoid, un-rotate, mean) — used as an in-script correctness check.
# ---------------------------------------------------------------------------
def _reference_forward(x, w, b):
    x = x.astype(jnp.float32)
    B, C, H, W = x.shape
    xr = x.reshape(B * C, H, W)
    mean = xr.mean(axis=(1, 2), keepdims=True)
    var = ((xr - mean) ** 2).sum(axis=(1, 2), keepdims=True) / (H * W - 1)
    y = (xr - mean) / (jnp.sqrt(var) + 1e-5)
    y = jnp.where(y > 5.0, (y - 5.0) * 0.001 + 5.0, y)
    y = jnp.where(y < -3.0, (y + 3.0) * 0.001 - 3.0, y)
    xn = y.reshape(B, C, H, W)

    views = []
    for k in range(4):
        xk = jnp.rot90(xn, k=k, axes=(-2, -1))
        ok = jax.lax.conv_general_dilated(
            xk, w, window_strides=(1, 1), padding="SAME",
            dimension_numbers=("NCHW", "OIHW", "NCHW"))[:, 0] + b[0]
        ok = jax.nn.sigmoid(ok)
        views.append(jnp.rot90(ok, k=-k, axes=(-2, -1)))
    return jnp.stack(views, axis=0).mean(axis=0)        # (B, H, W)


if __name__ == "__main__":
    key = jax.random.PRNGKey(0)
    kx, kw = jax.random.split(key, 2)

    B, C, H, W = 2, CFG.in_chans, CFG.image_size, CFG.image_size
    x = jax.random.normal(kx, (B, C, H, W), dtype=jnp.float32)

    # deterministic synthetic parameters for the conv head (out=target_size=1)
    w = 0.1 * jax.random.normal(kw, (CFG.target_size, C, 3, 3), dtype=jnp.float32)
    b = jnp.full((CFG.target_size,), 0.05, dtype=jnp.float32)

    fwd = jax.jit(custom_model_forward)
    out = jax.block_until_ready(fwd(x, w, b))
    assert out.shape == (B, H, W)
    assert bool(jnp.all(jnp.isfinite(out)))

    # Check the fused kernel against the literal rotate/conv/unrotate pipeline.
    ref = jax.block_until_ready(_reference_forward(x, w, b))
    max_err = float(jnp.max(jnp.abs(out - ref)))
    assert max_err < 5e-3, f"fused kernel mismatch vs reference: {max_err}"

    print("KERNEL_OK")
</pallas_src>

<mosaic_0001>
module attributes {stable_mosaic.version = 11 : i64} {
  func.func @_fused_forward_kernel(%arg0: i32, %arg1: memref<36xf32, #tpu.memory_space<smem>>, %arg2: memref<1xf32, #tpu.memory_space<smem>>, %arg3: memref<1x1x16x16xf32, #tpu.memory_space<vmem>>, %arg4: memref<1x16x16xf32, #tpu.memory_space<vmem>>, %arg5: memref<1x1x18x18xf32, #tpu.memory_space<vmem>>) attributes {dimension_semantics = [#tpu.dimension_semantics<parallel>], iteration_bounds = array<i64: 2>, scalar_prefetch = 0 : i64, scratch_operands = 1 : i64, tpu.core_type = #tpu.core_type<tc>, window_params = [{transform_indices = @transform_0, window_bounds = array<i64: 36>}, {transform_indices = @transform_1, window_bounds = array<i64: 1>}, {transform_indices = @transform_2, window_bounds = array<i64: 1, 1, 16, 16>}, {transform_indices = @transform_3, window_bounds = array<i64: 1, 16, 16>}]} {
    %c0 = arith.constant 0 : index
    %c0_0 = arith.constant 0 : index
    %c0_1 = arith.constant 0 : index
    %c0_2 = arith.constant 0 : index
    %0 = vector.load %arg3[%c0, %c0_0, %c0_1, %c0_2] : memref<1x1x16x16xf32, #tpu.memory_space<vmem>>, vector<1x1x16x16xf32>
    %cst = arith.constant dense<0.000000e+00> : vector<1x1x16xf32>
    %1 = vector.multi_reduction <add>, %0, %cst [3] : vector<1x1x16x16xf32> to vector<1x1x16xf32>
    %2 = vector.shape_cast %1 : vector<1x1x16xf32> to vector<1x1x16x1xf32>
    %cst_3 = arith.constant dense<0.000000e+00> : vector<1x1x1xf32>
    %3 = vector.multi_reduction <add>, %2, %cst_3 [2] : vector<1x1x16x1xf32> to vector<1x1x1xf32>
    %4 = vector.shape_cast %3 : vector<1x1x1xf32> to vector<1x1x1x1xf32>
    %cst_4 = arith.constant 2.560000e+02 : f32
    %5 = vector.broadcast %cst_4 : f32 to vector<1x1x1x1xf32>
    %6 = arith.divf %4, %5 : vector<1x1x1x1xf32>
    %7 = vector.broadcast %6 : vector<1x1x1x1xf32> to vector<1x1x16x16xf32>
    %8 = arith.subf %0, %7 : vector<1x1x16x16xf32>
    %9 = arith.mulf %8, %8 : vector<1x1x16x16xf32>
    %cst_5 = arith.constant dense<0.000000e+00> : vector<1x1x16xf32>
    %10 = vector.multi_reduction <add>, %9, %cst_5 [3] : vector<1x1x16x16xf32> to vector<1x1x16xf32>
    %11 = vector.shape_cast %10 : vector<1x1x16xf32> to vector<1x1x16x1xf32>
    %cst_6 = arith.constant dense<0.000000e+00> : vector<1x1x1xf32>
    %12 = vector.multi_reduction <add>, %11, %cst_6 [2] : vector<1x1x16x1xf32> to vector<1x1x1xf32>
    %13 = vector.shape_cast %12 : vector<1x1x1xf32> to vector<1x1x1x1xf32>
    %cst_7 = arith.constant 2.550000e+02 : f32
    %14 = vector.broadcast %cst_7 : f32 to vector<1x1x1x1xf32>
    %15 = arith.divf %13, %14 : vector<1x1x1x1xf32>
    %16 = math.sqrt %15 : vector<1x1x1x1xf32>
    %cst_8 = arith.constant 9.99999974E-6 : f32
    %17 = vector.broadcast %cst_8 : f32 to vector<1x1x1x1xf32>
    %18 = arith.addf %16, %17 : vector<1x1x1x1xf32>
    %19 = vector.broadcast %18 : vector<1x1x1x1xf32> to vector<1x1x16x16xf32>
    %20 = arith.divf %8, %19 : vector<1x1x16x16xf32>
    %cst_9 = arith.constant 5.000000e+00 : f32
    %21 = vector.broadcast %cst_9 : f32 to vector<1x1x16x16xf32>
    %22 = arith.cmpf ogt, %20, %21 : vector<1x1x16x16xf32>
    %cst_10 = arith.constant 5.000000e+00 : f32
    %23 = vector.broadcast %cst_10 : f32 to vector<1x1x16x16xf32>
    %24 = arith.subf %20, %23 : vector<1x1x16x16xf32>
    %cst_11 = arith.constant 1.000000e-03 : f32
    %25 = vector.broadcast %cst_11 : f32 to vector<1x1x16x16xf32>
    %26 = arith.mulf %24, %25 : vector<1x1x16x16xf32>
    %cst_12 = arith.constant 5.000000e+00 : f32
    %27 = vector.broadcast %cst_12 : f32 to vector<1x1x16x16xf32>
    %28 = arith.addf %26, %27 : vector<1x1x16x16xf32>
    %29 = arith.select %22, %28, %20 : vector<1x1x16x16xi1>, vector<1x1x16x16xf32>
    %cst_13 = arith.constant -3.000000e+00 : f32
    %30 = vector.broadcast %cst_13 : f32 to vector<1x1x16x16xf32>
    %31 = arith.cmpf olt, %29, %30 : vector<1x1x16x16xf32>
    %cst_14 = arith.constant 3.000000e+00 : f32
    %32 = vector.broadcast %cst_14 : f32 to vector<1x1x16x16xf32>
    %33 = arith.addf %29, %32 : vector<1x1x16x16xf32>
    %cst_15 = arith.constant 1.000000e-03 : f32
    %34 = vector.broadcast %cst_15 : f32 to vector<1x1x16x16xf32>
    %35 = arith.mulf %33, %34 : vector<1x1x16x16xf32>
    %cst_16 = arith.constant 3.000000e+00 : f32
    %36 = vector.broadcast %cst_16 : f32 to vector<1x1x16x16xf32>
    %37 = arith.subf %35, %36 : vector<1x1x16x16xf32>
    %38 = arith.select %31, %37, %29 : vector<1x1x16x16xi1>, vector<1x1x16x16xf32>
    %cst_17 = arith.constant 0.000000e+00 : f32
    %39 = vector.broadcast %cst_17 : f32 to vector<1x1x18x18xf32>
    %c0_18 = arith.constant 0 : index
    %c0_19 = arith.constant 0 : index
    %c0_20 = arith.constant 0 : index
    %c0_21 = arith.constant 0 : index
    %40 = vector.load %arg5[%c0_18, %c0_19, %c0_20, %c0_21] : memref<1x1x18x18xf32, #tpu.memory_space<vmem>>, vector<1x1x18x18xf32>
    tpu.vector_store %arg5[%c0_18, %c0_19, %c0_20, %c0_21], %39 {strides = array<i32>} : memref<1x1x18x18xf32, #tpu.memory_space<vmem>>, vector<1x1x18x18xf32>,
    %c0_22 = arith.constant 0 : index
    %c0_23 = arith.constant 0 : index
    %c1 = arith.constant 1 : index
    %c1_24 = arith.constant 1 : index
    %41 = vector.load %arg5[%c0_22, %c0_23, %c1, %c1_24] : memref<1x1x18x18xf32, #tpu.memory_space<vmem>>, vector<1x1x16x16xf32>
    tpu.vector_store %arg5[%c0_22, %c0_23, %c1, %c1_24], %38 {strides = array<i32>} : memref<1x1x18x18xf32, #tpu.memory_space<vmem>>, vector<1x1x16x16xf32>,
    %cst_25 = arith.constant 0.000000e+00 : f32
    %42 = vector.broadcast %cst_25 : f32 to vector<1x16x16xf32>
    %cst_26 = arith.constant 0.000000e+00 : f32
    %43 = vector.broadcast %cst_26 : f32 to vector<1x16x16xf32>
    %cst_27 = arith.constant 0.000000e+00 : f32
    %44 = vector.broadcast %cst_27 : f32 to vector<1x16x16xf32>
    %cst_28 = arith.constant 0.000000e+00 : f32
    %45 = vector.broadcast %cst_28 : f32 to vector<1x16x16xf32>
    %c0_29 = arith.constant 0 : index
    %c0_30 = arith.constant 0 : index
    %c0_31 = arith.constant 0 : index
    %c0_32 = arith.constant 0 : index
    %46 = vector.load %arg5[%c0_29, %c0_30, %c0_31, %c0_32] : memref<1x1x18x18xf32, #tpu.memory_space<vmem>>, vector<1x1x16x16xf32>
    %47 = vector.shape_cast %46 : vector<1x1x16x16xf32> to vector<1x16x16xf32>
    %c0_33 = arith.constant 0 : index
    %48 = memref.load %arg1[%c0_33] : memref<36xf32, #tpu.memory_space<smem>>
    %49 = vector.broadcast %48 : f32 to vector<1x16x16xf32>
    %50 = arith.mulf %49, %47 : vector<1x16x16xf32>
    %51 = arith.addf %42, %50 : vector<1x16x16xf32>
    %c9 = arith.constant 9 : index
    %52 = memref.load %arg1[%c9] : memref<36xf32, #tpu.memory_space<smem>>
    %53 = vector.broadcast %52 : f32 to vector<1x16x16xf32>
    %54 = arith.mulf %53, %47 : vector<1x16x16xf32>
    %55 = arith.addf %43, %54 : vector<1x16x16xf32>
    %c18 = arith.constant 18 : index
    %56 = memref.load %arg1[%c18] : memref<36xf32, #tpu.memory_space<smem>>
    %57 = vector.broadcast %56 : f32 to vector<1x16x16xf32>
    %58 = arith.mulf %57, %47 : vector<1x16x16xf32>
    %59 = arith.addf %44, %58 : vector<1x16x16xf32>
    %c27 = arith.constant 27 : index
    %60 = memref.load %arg1[%c27] : memref<36xf32, #tpu.memory_space<smem>>
    %61 = vector.broadcast %60 : f32 to vector<1x16x16xf32>
    %62 = arith.mulf %61, %47 : vector<1x16x16xf32>
    %63 = arith.addf %45, %62 : vector<1x16x16xf32>
    %c0_34 = arith.constant 0 : index
    %c0_35 = arith.constant 0 : index
    %c0_36 = arith.constant 0 : index
    %c1_37 = arith.constant 1 : index
    %64 = vector.load %arg5[%c0_34, %c0_35, %c0_36, %c1_37] : memref<1x1x18x18xf32, #tpu.memory_space<vmem>>, vector<1x1x16x16xf32>
    %65 = vector.shape_cast %64 : vector<1x1x16x16xf32> to vector<1x16x16xf32>
    %c1_38 = arith.constant 1 : index
    %66 = memref.load %arg1[%c1_38] : memref<36xf32, #tpu.memory_space<smem>>
    %67 = vector.broadcast %66 : f32 to vector<1x16x16xf32>
    %68 = arith.mulf %67, %65 : vector<1x16x16xf32>
    %69 = arith.addf %51, %68 : vector<1x16x16xf32>
    %c10 = arith.constant 10 : index
    %70 = memref.load %arg1[%c10] : memref<36xf32, #tpu.memory_space<smem>>
    %71 = vector.broadcast %70 : f32 to vector<1x16x16xf32>
    %72 = arith.mulf %71, %65 : vector<1x16x16xf32>
    %73 = arith.addf %55, %72 : vector<1x16x16xf32>
    %c19 = arith.constant 19 : index
    %74 = memref.load %arg1[%c19] : memref<36xf32, #tpu.memory_space<smem>>
    %75 = vector.broadcast %74 : f32 to vector<1x16x16xf32>
    %76 = arith.mulf %75, %65 : vector<1x16x16xf32>
    %77 = arith.addf %59, %76 : vector<1x16x16xf32>
    %c28 = arith.constant 28 : index
    %78 = memref.load %arg1[%c28] : memref<36xf32, #tpu.memory_space<smem>>
    %79 = vector.broadcast %78 : f32 to vector<1x16x16xf32>
    %80 = arith.mulf %79, %65 : vector<1x16x16xf32>
    %81 = arith.addf %63, %80 : vector<1x16x16xf32>
    %c0_39 = arith.constant 0 : index
    %c0_40 = arith.constant 0 : index
    %c0_41 = arith.constant 0 : index
    %c2 = arith.constant 2 : index
    %82 = vector.load %arg5[%c0_39, %c0_40, %c0_41, %c2] : memref<1x1x18x18xf32, #tpu.memory_space<vmem>>, vector<1x1x16x16xf32>
    %83 = vector.shape_cast %82 : vector<1x1x16x16xf32> to vector<1x16x16xf32>
    %c2_42 = arith.constant 2 : index
    %84 = memref.load %arg1[%c2_42] : memref<36xf32, #tpu.memory_space<smem>>
    %85 = vector.broadcast %84 : f32 to vector<1x16x16xf32>
    %86 = arith.mulf %85, %83 : vector<1x16x16xf32>
    %87 = arith.addf %69, %86 : vector<1x16x16xf32>
    %c11 = arith.constant 11 : index
    %88 = memref.load %arg1[%c11] : memref<36xf32, #tpu.memory_space<smem>>
    %89 = vector.broadcast %88 : f32 to vector<1x16x16xf32>
    %90 = arith.mulf %89, %83 : vector<1x16x16xf32>
    %91 = arith.addf %73, %90 : vector<1x16x16xf32>
    %c20 = arith.constant 20 : index
    %92 = memref.load %arg1[%c20] : memref<36xf32, #tpu.memory_space<smem>>
    %93 = vector.broadcast %92 : f32 to vector<1x16x16xf32>
    %94 = arith.mulf %93, %83 : vector<1x16x16xf32>
    %95 = arith.addf %77, %94 : vector<1x16x16xf32>
    %c29 = arith.constant 29 : index
    %96 = memref.load %arg1[%c29] : memref<36xf32, #tpu.memory_space<smem>>
    %97 = vector.broadcast %96 : f32 to vector<1x16x16xf32>
    %98 = arith.mulf %97, %83 : vector<1x16x16xf32>
    %99 = arith.addf %81, %98 : vector<1x16x16xf32>
    %c0_43 = arith.constant 0 : index
    %c0_44 = arith.constant 0 : index
    %c1_45 = arith.constant 1 : index
    %c0_46 = arith.constant 0 : index
    %100 = vector.load %arg5[%c0_43, %c0_44, %c1_45, %c0_46] : memref<1x1x18x18xf32, #tpu.memory_space<vmem>>, vector<1x1x16x16xf32>
    %101 = vector.shape_cast %100 : vector<1x1x16x16xf32> to vector<1x16x16xf32>
    %c3 = arith.constant 3 : index
    %102 = memref.load %arg1[%c3] : memref<36xf32, #tpu.memory_space<smem>>
    %103 = vector.broadcast %102 : f32 to vector<1x16x16xf32>
    %104 = arith.mulf %103, %101 : vector<1x16x16xf32>
    %105 = arith.addf %87, %104 : vector<1x16x16xf32>
    %c12 = arith.constant 12 : index
    %106 = memref.load %arg1[%c12] : memref<36xf32, #tpu.memory_space<smem>>
    %107 = vector.broadcast %106 : f32 to vector<1x16x16xf32>
    %108 = arith.mulf %107, %101 : vector<1x16x16xf32>
    %109 = arith.addf %91, %108 : vector<1x16x16xf32>
    %c21 = arith.constant 21 : index
    %110 = memref.load %arg1[%c21] : memref<36xf32, #tpu.memory_space<smem>>
    %111 = vector.broadcast %110 : f32 to vector<1x16x16xf32>
    %112 = arith.mulf %111, %101 : vector<1x16x16xf32>
    %113 = arith.addf %95, %112 : vector<1x16x16xf32>
    %c30 = arith.constant 30 : index
    %114 = memref.load %arg1[%c30] : memref<36xf32, #tpu.memory_space<smem>>
    %115 = vector.broadcast %114 : f32 to vector<1x16x16xf32>
    %116 = arith.mulf %115, %101 : vector<1x16x16xf32>
    %117 = arith.addf %99, %116 : vector<1x16x16xf32>
    %c0_47 = arith.constant 0 : index
    %c0_48 = arith.constant 0 : index
    %c1_49 = arith.constant 1 : index
    %c1_50 = arith.constant 1 : index
    %118 = vector.load %arg5[%c0_47, %c0_48, %c1_49, %c1_50] : memref<1x1x18x18xf32, #tpu.memory_space<vmem>>, vector<1x1x16x16xf32>
    %119 = vector.shape_cast %118 : vector<1x1x16x16xf32> to vector<1x16x16xf32>
    %c4 = arith.constant 4 : index
    %120 = memref.load %arg1[%c4] : memref<36xf32, #tpu.memory_space<smem>>
    %121 = vector.broadcast %120 : f32 to vector<1x16x16xf32>
    %122 = arith.mulf %121, %119 : vector<1x16x16xf32>
    %123 = arith.addf %105, %122 : vector<1x16x16xf32>
    %c13 = arith.constant 13 : index
    %124 = memref.load %arg1[%c13] : memref<36xf32, #tpu.memory_space<smem>>
    %125 = vector.broadcast %124 : f32 to vector<1x16x16xf32>
    %126 = arith.mulf %125, %119 : vector<1x16x16xf32>
    %127 = arith.addf %109, %126 : vector<1x16x16xf32>
    %c22 = arith.constant 22 : index
    %128 = memref.load %arg1[%c22] : memref<36xf32, #tpu.memory_space<smem>>
    %129 = vector.broadcast %128 : f32 to vector<1x16x16xf32>
    %130 = arith.mulf %129, %119 : vector<1x16x16xf32>
    %131 = arith.addf %113, %130 : vector<1x16x16xf32>
    %c31 = arith.constant 31 : index
    %132 = memref.load %arg1[%c31] : memref<36xf32, #tpu.memory_space<smem>>
    %133 = vector.broadcast %132 : f32 to vector<1x16x16xf32>
    %134 = arith.mulf %133, %119 : vector<1x16x16xf32>
    %135 = arith.addf %117, %134 : vector<1x16x16xf32>
    %c0_51 = arith.constant 0 : index
    %c0_52 = arith.constant 0 : index
    %c1_53 = arith.constant 1 : index
    %c2_54 = arith.constant 2 : index
    %136 = vector.load %arg5[%c0_51, %c0_52, %c1_53, %c2_54] : memref<1x1x18x18xf32, #tpu.memory_space<vmem>>, vector<1x1x16x16xf32>
    %137 = vector.shape_cast %136 : vector<1x1x16x16xf32> to vector<1x16x16xf32>
    %c5 = arith.constant 5 : index
    %138 = memref.load %arg1[%c5] : memref<36xf32, #tpu.memory_space<smem>>
    %139 = vector.broadcast %138 : f32 to vector<1x16x16xf32>
    %140 = arith.mulf %139, %137 : vector<1x16x16xf32>
    %141 = arith.addf %123, %140 : vector<1x16x16xf32>
    %c14 = arith.constant 14 : index
    %142 = memref.load %arg1[%c14] : memref<36xf32, #tpu.memory_space<smem>>
    %143 = vector.broadcast %142 : f32 to vector<1x16x16xf32>
    %144 = arith.mulf %143, %137 : vector<1x16x16xf32>
    %145 = arith.addf %127, %144 : vector<1x16x16xf32>
    %c23 = arith.constant 23 : index
    %146 = memref.load %arg1[%c23] : memref<36xf32, #tpu.memory_space<smem>>
    %147 = vector.broadcast %146 : f32 to vector<1x16x16xf32>
    %148 = arith.mulf %147, %137 : vector<1x16x16xf32>
    %149 = arith.addf %131, %148 : vector<1x16x16xf32>
    %c32 = arith.constant 32 : index
    %150 = memref.load %arg1[%c32] : memref<36xf32, #tpu.memory_space<smem>>
    %151 = vector.broadcast %150 : f32 to vector<1x16x16xf32>
    %152 = arith.mulf %151, %137 : vector<1x16x16xf32>
    %153 = arith.addf %135, %152 : vector<1x16x16xf32>
    %c0_55 = arith.constant 0 : index
    %c0_56 = arith.constant 0 : index
    %c2_57 = arith.constant 2 : index
    %c0_58 = arith.constant 0 : index
    %154 = vector.load %arg5[%c0_55, %c0_56, %c2_57, %c0_58] : memref<1x1x18x18xf32, #tpu.memory_space<vmem>>, vector<1x1x16x16xf32>
    %155 = vector.shape_cast %154 : vector<1x1x16x16xf32> to vector<1x16x16xf32>
    %c6 = arith.constant 6 : index
    %156 = memref.load %arg1[%c6] : memref<36xf32, #tpu.memory_space<smem>>
    %157 = vector.broadcast %156 : f32 to vector<1x16x16xf32>
    %158 = arith.mulf %157, %155 : vector<1x16x16xf32>
    %159 = arith.addf %141, %158 : vector<1x16x16xf32>
    %c15 = arith.constant 15 : index
    %160 = memref.load %arg1[%c15] : memref<36xf32, #tpu.memory_space<smem>>
    %161 = vector.broadcast %160 : f32 to vector<1x16x16xf32>
    %162 = arith.mulf %161, %155 : vector<1x16x16xf32>
    %163 = arith.addf %145, %162 : vector<1x16x16xf32>
    %c24 = arith.constant 24 : index
    %164 = memref.load %arg1[%c24] : memref<36xf32, #tpu.memory_space<smem>>
    %165 = vector.broadcast %164 : f32 to vector<1x16x16xf32>
    %166 = arith.mulf %165, %155 : vector<1x16x16xf32>
    %167 = arith.addf %149, %166 : vector<1x16x16xf32>
    %c33 = arith.constant 33 : index
    %168 = memref.load %arg1[%c33] : memref<36xf32, #tpu.memory_space<smem>>
    %169 = vector.broadcast %168 : f32 to vector<1x16x16xf32>
    %170 = arith.mulf %169, %155 : vector<1x16x16xf32>
    %171 = arith.addf %153, %170 : vector<1x16x16xf32>
    %c0_59 = arith.constant 0 : index
    %c0_60 = arith.constant 0 : index
    %c2_61 = arith.constant 2 : index
    %c1_62 = arith.constant 1 : index
    %172 = vector.load %arg5[%c0_59, %c0_60, %c2_61, %c1_62] : memref<1x1x18x18xf32, #tpu.memory_space<vmem>>, vector<1x1x16x16xf32>
    %173 = vector.shape_cast %172 : vector<1x1x16x16xf32> to vector<1x16x16xf32>
    %c7 = arith.constant 7 : index
    %174 = memref.load %arg1[%c7] : memref<36xf32, #tpu.memory_space<smem>>
    %175 = vector.broadcast %174 : f32 to vector<1x16x16xf32>
    %176 = arith.mulf %175, %173 : vector<1x16x16xf32>
    %177 = arith.addf %159, %176 : vector<1x16x16xf32>
    %c16 = arith.constant 16 : index
    %178 = memref.load %arg1[%c16] : memref<36xf32, #tpu.memory_space<smem>>
    %179 = vector.broadcast %178 : f32 to vector<1x16x16xf32>
    %180 = arith.mulf %179, %173 : vector<1x16x16xf32>
    %181 = arith.addf %163, %180 : vector<1x16x16xf32>
    %c25 = arith.constant 25 : index
    %182 = memref.load %arg1[%c25] : memref<36xf32, #tpu.memory_space<smem>>
    %183 = vector.broadcast %182 : f32 to vector<1x16x16xf32>
    %184 = arith.mulf %183, %173 : vector<1x16x16xf32>
    %185 = arith.addf %167, %184 : vector<1x16x16xf32>
    %c34 = arith.constant 34 : index
    %186 = memref.load %arg1[%c34] : memref<36xf32, #tpu.memory_space<smem>>
    %187 = vector.broadcast %186 : f32 to vector<1x16x16xf32>
    %188 = arith.mulf %187, %173 : vector<1x16x16xf32>
    %189 = arith.addf %171, %188 : vector<1x16x16xf32>
    %c0_63 = arith.constant 0 : index
    %c0_64 = arith.constant 0 : index
    %c2_65 = arith.constant 2 : index
    %c2_66 = arith.constant 2 : index
    %190 = vector.load %arg5[%c0_63, %c0_64, %c2_65, %c2_66] : memref<1x1x18x18xf32, #tpu.memory_space<vmem>>, vector<1x1x16x16xf32>
    %191 = vector.shape_cast %190 : vector<1x1x16x16xf32> to vector<1x16x16xf32>
    %c8 = arith.constant 8 : index
    %192 = memref.load %arg1[%c8] : memref<36xf32, #tpu.memory_space<smem>>
    %193 = vector.broadcast %192 : f32 to vector<1x16x16xf32>
    %194 = arith.mulf %193, %191 : vector<1x16x16xf32>
    %195 = arith.addf %177, %194 : vector<1x16x16xf32>
    %c17 = arith.constant 17 : index
    %196 = memref.load %arg1[%c17] : memref<36xf32, #tpu.memory_space<smem>>
    %197 = vector.broadcast %196 : f32 to vector<1x16x16xf32>
    %198 = arith.mulf %197, %191 : vector<1x16x16xf32>
    %199 = arith.addf %181, %198 : vector<1x16x16xf32>
    %c26 = arith.constant 26 : index
    %200 = memref.load %arg1[%c26] : memref<36xf32, #tpu.memory_space<smem>>
    %201 = vector.broadcast %200 : f32 to vector<1x16x16xf32>
    %202 = arith.mulf %201, %191 : vector<1x16x16xf32>
    %203 = arith.addf %185, %202 : vector<1x16x16xf32>
    %c35 = arith.constant 35 : index
    %204 = memref.load %arg1[%c35] : memref<36xf32, #tpu.memory_space<smem>>
    %205 = vector.broadcast %204 : f32 to vector<1x16x16xf32>
    %206 = arith.mulf %205, %191 : vector<1x16x16xf32>
    %207 = arith.addf %189, %206 : vector<1x16x16xf32>
    %cst_67 = arith.constant 0.000000e+00 : f32
    %208 = vector.broadcast %cst_67 : f32 to vector<1x16x16xf32>
    %c0_68 = arith.constant 0 : index
    %209 = memref.load %arg2[%c0_68] : memref<1xf32, #tpu.memory_space<smem>>
    %210 = vector.broadcast %209 : f32 to vector<1x16x16xf32>
    %211 = arith.addf %195, %210 : vector<1x16x16xf32>
    %cst_69 = arith.constant 0.000000e+00 : f32
    %212 = vector.broadcast %cst_69 : f32 to vector<1x16x16xf32>
    %213 = arith.subf %212, %211 : vector<1x16x16xf32>
    %214 = math.exp %213 : vector<1x16x16xf32>
    %cst_70 = arith.constant 1.000000e+00 : f32
    %215 = vector.broadcast %cst_70 : f32 to vector<1x16x16xf32>
    %216 = arith.addf %215, %214 : vector<1x16x16xf32>
    %217 = tpu.reciprocal %216 {approx = true} : vector<1x16x16xf32> -> vector<1x16x16xf32>
    %218 = arith.addf %208, %217 : vector<1x16x16xf32>
    %c0_71 = arith.constant 0 : index
    %219 = memref.load %arg2[%c0_71] : memref<1xf32, #tpu.memory_space<smem>>
    %220 = vector.broadcast %219 : f32 to vector<1x16x16xf32>
    %221 = arith.addf %199, %220 : vector<1x16x16xf32>
    %cst_72 = arith.constant 0.000000e+00 : f32
    %222 = vector.broadcast %cst_72 : f32 to vector<1x16x16xf32>
    %223 = arith.subf %222, %221 : vector<1x16x16xf32>
    %224 = math.exp %223 : vector<1x16x16xf32>
    %cst_73 = arith.constant 1.000000e+00 : f32
    %225 = vector.broadcast %cst_73 : f32 to vector<1x16x16xf32>
    %226 = arith.addf %225, %224 : vector<1x16x16xf32>
    %227 = tpu.reciprocal %226 {approx = true} : vector<1x16x16xf32> -> vector<1x16x16xf32>
    %228 = arith.addf %218, %227 : vector<1x16x16xf32>
    %c0_74 = arith.constant 0 : index
    %229 = memref.load %arg2[%c0_74] : memref<1xf32, #tpu.memory_space<smem>>
    %230 = vector.broadcast %229 : f32 to vector<1x16x16xf32>
    %231 = arith.addf %203, %230 : vector<1x16x16xf32>
    %cst_75 = arith.constant 0.000000e+00 : f32
    %232 = vector.broadcast %cst_75 : f32 to vector<1x16x16xf32>
    %233 = arith.subf %232, %231 : vector<1x16x16xf32>
    %234 = math.exp %233 : vector<1x16x16xf32>
    %cst_76 = arith.constant 1.000000e+00 : f32
    %235 = vector.broadcast %cst_76 : f32 to vector<1x16x16xf32>
    %236 = arith.addf %235, %234 : vector<1x16x16xf32>
    %237 = tpu.reciprocal %236 {approx = true} : vector<1x16x16xf32> -> vector<1x16x16xf32>
    %238 = arith.addf %228, %237 : vector<1x16x16xf32>
    %c0_77 = arith.constant 0 : index
    %239 = memref.load %arg2[%c0_77] : memref<1xf32, #tpu.memory_space<smem>>
    %240 = vector.broadcast %239 : f32 to vector<1x16x16xf32>
    %241 = arith.addf %207, %240 : vector<1x16x16xf32>
    %cst_78 = arith.constant 0.000000e+00 : f32
    %242 = vector.broadcast %cst_78 : f32 to vector<1x16x16xf32>
    %243 = arith.subf %242, %241 : vector<1x16x16xf32>
    %244 = math.exp %243 : vector<1x16x16xf32>
    %cst_79 = arith.constant 1.000000e+00 : f32
    %245 = vector.broadcast %cst_79 : f32 to vector<1x16x16xf32>
    %246 = arith.addf %245, %244 : vector<1x16x16xf32>
    %247 = tpu.reciprocal %246 {approx = true} : vector<1x16x16xf32> -> vector<1x16x16xf32>
    %248 = arith.addf %238, %247 : vector<1x16x16xf32>
    %cst_80 = arith.constant 2.500000e-01 : f32
    %249 = vector.broadcast %cst_80 : f32 to vector<1x16x16xf32>
    %250 = arith.mulf %248, %249 : vector<1x16x16xf32>
    %c0_81 = arith.constant 0 : index
    %c0_82 = arith.constant 0 : index
    %c0_83 = arith.constant 0 : index
    %251 = vector.load %arg4[%c0_81, %c0_82, %c0_83] : memref<1x16x16xf32, #tpu.memory_space<vmem>>, vector<1x16x16xf32>
    tpu.vector_store %arg4[%c0_81, %c0_82, %c0_83], %250 {strides = array<i32>} : memref<1x16x16xf32, #tpu.memory_space<vmem>>, vector<1x16x16xf32>,
    return
  }
  func.func @transform_0(%arg0: i32) -> i32 {
    %c0_i32 = arith.constant 0 : i32
    %c0_i32_0 = arith.constant 0 : i32
    return %c0_i32 : i32
  }
  func.func @transform_1(%arg0: i32) -> i32 {
    %c0_i32 = arith.constant 0 : i32
    %c0_i32_0 = arith.constant 0 : i32
    return %c0_i32 : i32
  }
  func.func @transform_2(%arg0: i32) -> (i32, i32, i32, i32) {
    %c0_i32 = arith.constant 0 : i32
    %c0_i32_0 = arith.constant 0 : i32
    %c0_i32_1 = arith.constant 0 : i32
    %c0_i32_2 = arith.constant 0 : i32
    return %arg0, %c0_i32, %c0_i32_0, %c0_i32_1 : i32, i32, i32, i32
  }
  func.func @transform_3(%arg0: i32) -> (i32, i32, i32) {
    %c0_i32 = arith.constant 0 : i32
    %c0_i32_0 = arith.constant 0 : i32
    %c0_i32_1 = arith.constant 0 : i32
    return %arg0, %c0_i32, %c0_i32_0 : i32, i32, i32
  }
}

</mosaic_0001>

<llo_original>
// kernel: custom_model_forward.1
$region0: #{custom_model_forward.1}
  #allocation0 [shape = 'u32[]', space=smem, size = 0x4, offset = 0x4, fixed_abs, tag = 'smem constant byte address 0x4 - core index']
  #allocation1 [shape = 'u32[144,128]{1,0:T(1,128)}', space=vmem, size = 0x12000, scoped, tag = 'internal scratch']
  #allocation2 [shape = 'f32[1,1,18,18]{3,2,1,0:T(8,128)}', space=vmem, size = 0x3000, scoped, tag = 'scratch operand']
  #allocation3 [shape = 'f32[1]{0:T(128)S(6)}', space=smem, size = 0x200, scoped, tag = 'scoped memory for custom_model_forward.1']
  %s0 = inlined_call_operand.vmem [shape: f32[36], index: 0, kind: input, shape index: {}]
  %s1 = inlined_call_operand.<no memory space> [shape: f32[1], index: 1, kind: input, shape index: {}]
  %s2 = inlined_call_operand.vmem [shape: f32[2,1,16,16], index: 2, kind: input, shape index: {}]
  %s3 = inlined_call_operand.hbm [shape: f32[2,16,16], index: 3, kind: output, shape index: {}]
  %s4 = sld [smem:[#allocation0]]
  $region49: #{custom_model_forward.1} parent=0
    _
  %s6 = ssub.s32 1, %s4
  %s7 = scalar_select 0, %s6, %s4
  %8 = sst [smem:[#allocation3]] %s1
  $region1: #{custom_model_forward.1} parent=0
    #allocation4 [shape = 'u8[512]{0}', space=smem, size = 0x200, scoped, tag = 'input window, operand 0, single buffered']
    #allocation5 [shape = 's32[2]{0}', space=sflag, size = 0x8, scoped, tag = 'scoped memory for custom_model_forward.1']
    #allocation6 [shape = 's32[2]{0}', space=sflag, size = 0x8, scoped, tag = 'scoped memory for custom_model_forward.1']
    #allocation7 [shape = 'u8[16384]{0}', space=vmem, size = 0x4000, scoped, tag = 'output window, operand 0']
    %9 = vsyncpa [#allocation6], 0
    %10 = vsyncpa [#allocation5], 0
    %s11 = scalar_lea.sflag [#allocation5], 1
    %12 = vsyncpa %s11, 0
    loop: start=0, step=1, limit=4
    $region2: #{custom_model_forward.1} parent=1 // loop_pre_header
      _
    $region3: #{custom_model_forward.1} parent=1 // loop_header
      %s14 = sphi 0, %s18
      %p15 = scmp.ge.s32.totalorder %s14, 4
      %s22 = sphi 0, %s22
      %s24 = sphi 0, %s22
      %s25 = sphi 0, %s24
      %s39 = sphi 0, %s25
      %s43 = sphi 0, %s43
      %s45 = sphi 0, %s43
      %s46 = sphi 0, %s45
      %s60 = sphi 0, %s46
      %s66 = sphi 0, %s68
      %s69 = sphi 0, %s66
      %s70 = sphi 0, %s69
      %s86 = sphi 0, %s70
      %s92 = sphi 0, %s94
      %s95 = sphi 0, %s92
      %s96 = sphi 0, %s95
      %s112 = sphi 0, %s96
    $region4: #{custom_model_forward.1} parent=1 // loop_header_branch
      %17 = sbr.rel (%p15) target = $region8
    $region5: #{custom_model_forward.1} parent=1 // loop_body
      %s19 = ssub.s32 %s14, 1
      %s20 = ssub.s32 %s14, 2
      %s21 = sadd.s32 %s14, 1
      %s23 = sadd.s32 %s22, 1
      %p26 = scmp.eq.s32.totalorder %s14, 1
      %p27 = scmp.ne.s32.totalorder %s22, %s24
      %p28 = scmp.eq.s32.totalorder %s14, 0
      %p29 = por %p27, %p28
      %p30 = scmp.ne.s32.totalorder %s22, %s24
      %p31 = scmp.eq.s32.totalorder %s19, 1
      %p32 = por %p30, %p31
      %p33 = scmp.ne.s32.totalorder %s24, %s25
      %p34 = scmp.eq.s32.totalorder %s19, 0
      %p35 = por %p33, %p34
      %p36 = scmp.ne.s32.totalorder %s24, %s25
      %p37 = scmp.eq.s32.totalorder %s20, 1
      %p38 = por %p36, %p37
      %p40 = scmp.ne.s32.totalorder %s25, %s39
      %p41 = scmp.eq.s32.totalorder %s20, 0
      %p42 = por %p40, %p41
      %s44 = sadd.s32 %s43, 1
      %p47 = scmp.eq.s32.totalorder %s14, 1
      %p48 = scmp.ne.s32.totalorder %s43, %s45
      %p49 = scmp.eq.s32.totalorder %s14, 0
      %p50 = por %p48, %p49
      %p51 = scmp.ne.s32.totalorder %s43, %s45
      %p52 = scmp.eq.s32.totalorder %s19, 1
      %p53 = por %p51, %p52
      %p54 = scmp.ne.s32.totalorder %s45, %s46
      %p55 = scmp.eq.s32.totalorder %s19, 0
      %p56 = por %p54, %p55
      %p57 = scmp.ne.s32.totalorder %s45, %s46
      %p58 = scmp.eq.s32.totalorder %s20, 1
      %p59 = por %p57, %p58
      %p61 = scmp.ne.s32.totalorder %s46, %s60
      %p62 = scmp.eq.s32.totalorder %s20, 0
      %p63 = por %p61, %p62
      %s64 = ssub.s32 %s14, %s21
      %p65 = scmp.eq.s32.totalorder %s64, 0
      %s67 = sadd.s32 %s66, 1
      %s68 = scalar_select %p65, %s66, %s67
      %p71 = pneg %p65
      %p72 = scmp.eq.s32.totalorder %s14, 1
      %p73 = por %p71, %p72
      %p74 = scmp.ne.s32.totalorder %s66, %s69
      %p75 = scmp.eq.s32.totalorder %s14, 0
      %p76 = por %p74, %p75
      %p77 = scmp.ne.s32.totalorder %s66, %s69
      %p78 = scmp.eq.s32.totalorder %s19, 1
      %p79 = por %p77, %p78
      %p80 = scmp.ne.s32.totalorder %s69, %s70
      %p81 = scmp.eq.s32.totalorder %s19, 0
      %p82 = por %p80, %p81
      %p83 = scmp.ne.s32.totalorder %s69, %s70
      %p84 = scmp.eq.s32.totalorder %s20, 1
      %p85 = por %p83, %p84
      %p87 = scmp.ne.s32.totalorder %s70, %s86
      %p88 = scmp.eq.s32.totalorder %s20, 0
      %p89 = por %p87, %p88
      %s90 = ssub.s32 %s14, %s21
      %p91 = scmp.eq.s32.totalorder %s90, 0
      %s93 = sadd.s32 %s92, 1
      %s94 = scalar_select %p91, %s92, %s93
      %p97 = pneg %p91
      %p98 = scmp.eq.s32.totalorder %s14, 1
      %p99 = por %p97, %p98
      %p100 = scmp.ne.s32.totalorder %s92, %s95
      %p101 = scmp.eq.s32.totalorder %s14, 0
      %p102 = por %p100, %p101
      %p103 = scmp.ne.s32.totalorder %s92, %s95
      %p104 = scmp.eq.s32.totalorder %s19, 1
      %p105 = por %p103, %p104
      %p106 = scmp.ne.s32.totalorder %s95, %s96
      %p107 = scmp.eq.s32.totalorder %s19, 0
      %p108 = por %p106, %p107
      %p109 = scmp.ne.s32.totalorder %s95, %s96
      %p110 = scmp.eq.s32.totalorder %s20, 1
      %p111 = por %p109, %p110
      %p113 = scmp.ne.s32.totalorder %s96, %s112
      %p114 = scmp.eq.s32.totalorder %s20, 0
      %p115 = por %p113, %p114
      %p116 = scmp.le.s32.totalorder 1, %s14
      %p117 = scmp.lt.s32.totalorder %s14, 3
      %p118 = pnand %p116, %p117
      %p119 = pneg %p118
      // Predicated region
      $region9: #{custom_model_forward.1} parent=5 // pred_check
        _
      $region10: #{custom_model_forward.1} parent=5 // pred_check_branch
        %121 = sbr.rel (%p118) target = $region12
      $region11: #{custom_model_forward.1} parent=5 // pred_region
        %s122 = ssub.s32 %s14, 1
        // Predicated region
        $region13: #{custom_model_forward.1} parent=11 // pred_check
          %p123 = pneg %p35
        $region14: #{custom_model_forward.1} parent=11 // pred_check_branch
          %125 = sbr.rel (%p123) target = $region16
        $region15: #{custom_model_forward.1} parent=11 // pred_region
          %s127 = ssub.s32 16, 16
          %128 = vsyncadd [#allocation6], %s127
          %s130 = sshll.u32 %s0, 4
          %s131 = int_to_ptr.vmem [resolvable:$true] %s130
          %133 = dma.vmem_to_smem %s131, 16, [#allocation4], [#allocation6]
        $region16: #{custom_model_forward.1} parent=11 // pred_fallthru
          _
        // Predicated region
        $region17: #{custom_model_forward.1} parent=11 // pred_check
          %p134 = pneg %p56
        $region18: #{custom_model_forward.1} parent=11 // pred_check_branch
          %136 = sbr.rel (%p134) target = $region20
        $region19: #{custom_model_forward.1} parent=11 // pred_region
          _
        $region20: #{custom_model_forward.1} parent=11 // pred_fallthru
          _
      $region12: #{custom_model_forward.1} parent=5 // pred_fallthru
        _
      %p137 = scmp.lt.s32.totalorder %s14, 2
      // Predicated region
      $region21: #{custom_model_forward.1} parent=5 // pred_check
        %p138 = pneg %p137
      $region22: #{custom_model_forward.1} parent=5 // pred_check_branch
        %140 = sbr.rel (%p138) target = $region24
      $region23: #{custom_model_forward.1} parent=5 // pred_region
        // Predicated region
        $region25: #{custom_model_forward.1} parent=23 // pred_check
          %p141 = pneg %p76
        $region26: #{custom_model_forward.1} parent=23 // pred_check_branch
          %143 = sbr.rel (%p141) target = $region28
        $region27: #{custom_model_forward.1} parent=23 // pred_region
          %p144 = scmp.lt.s32.totalorder %s14, 1
          %s145 = scalar_select %p144, %s14, 1
          %s146 = smul.addr %s145, 2
          %s147 = smul.addr %s146, 8
          %s148 = scalar_lea.vmem %s2, %s147
        $region28: #{custom_model_forward.1} parent=23 // pred_fallthru
          _
      $region24: #{custom_model_forward.1} parent=5 // pred_fallthru
        _
      %p149 = scmp.le.s32.totalorder 1, %s14
      %p150 = scmp.lt.s32.totalorder %s14, 3
      %p151 = pnand %p149, %p150
      %p152 = pneg %p151
      // Predicated region
      $region29: #{custom_model_forward.1} parent=5 // pred_check
        _
      $region30: #{custom_model_forward.1} parent=5 // pred_check_branch
        %154 = sbr.rel (%p151) target = $region32
      $region31: #{custom_model_forward.1} parent=5 // pred_region
        %s155 = ssub.s32 %s14, 1
        // Predicated region
        $region33: #{custom_model_forward.1} parent=31 // pred_check
          %p156 = pneg %p35
        $region34: #{custom_model_forward.1} parent=31 // pred_check_branch
          %158 = sbr.rel (%p156) target = $region36
        $region35: #{custom_model_forward.1} parent=31 // pred_region
          %159 = dma.done [#allocation6], 16
        $region36: #{custom_model_forward.1} parent=31 // pred_fallthru
          _
        %160 = sfence
        %p161 = pneg %p35
        %p162 = pneg %p32
        %p163 = pneg %p56
        %p164 = pneg %p53
        %p165 = scmp.lt.s32.totalorder %s19, 1
        %s166 = scalar_select %p165, %s19, 1
        %s167 = smul.addr %s166, 2
        %s168 = smul.addr %s167, 8
        %s169 = scalar_lea.vmem %s2, %s168
        %p170 = pneg %p82
        %p171 = pneg %p79
        %p172 = pneg %p108
        %p173 = pneg %p105
        %s174 = sand.u32 %s95, 1
        %s175 = scalar_lea.sflag [#allocation5], %s174
        %s176 = sand.u32 %s95, 1
        %s177 = smul.addr %s176, 16
        %s178 = scalar_lea.vmem [#allocation7], %s177
        %p179 = scmp.lt.s32.totalorder %s19, 1
        %s180 = scalar_select %p179, %s19, 1
        %s181 = smul.addr %s180, 2
        %s182 = smul.addr %s181, 8
        %s183 = scalar_lea.vmem %s2, %s182
        %v184 = vld [vmem:[%s183] sm:$0xff]
        %v185 = vld [vmem:[%s183 + $0x8] sm:$0xff]
        %vm186 = vcmask 130048
        %v187 = vsel %vm186, %v184, 0.0
        %188 = vadd.xlane.f32.xlu0 %v187
        %v189 = vpop.xlane.xlu0 %188
        %v190 = vsel %vm186, %v185, 0.0
        %191 = vadd.xlane.f32.xlu0 %v190
        %v192 = vpop.xlane.xlu0 %191
        %v193 = vadd.f32 %v189, %v192
        %v194 = vrot.slane %v193, 4
        %v195 = vadd.f32 %v193, %v194
        %v196 = vrot.slane %v195, 2
        %v197 = vadd.f32 %v195, %v196
        %v198 = vrot.slane %v197, 1
        %v199 = vadd.f32 %v197, %v198
        %v200 = vrcp.pop 256.0
        %v201 = vmul.f32 %v199, %v200
        %v202 = vsub.f32 %v184, %v201
        %v203 = vsub.f32 %v185, %v201
        %v204 = vmul.f32 %v202, %v202
        %v205 = vmul.f32 %v203, %v203
        %v206 = vsel %vm186, %v204, 0.0
        %207 = vadd.xlane.f32.xlu0 %v206
        %v208 = vpop.xlane.xlu0 %207
        %v209 = vsel %vm186, %v205, 0.0
        %210 = vadd.xlane.f32.xlu0 %v209
        %v211 = vpop.xlane.xlu0 %210
        %v212 = vadd.f32 %v208, %v211
        %v213 = vrot.slane %v212, 4
        %v214 = vadd.f32 %v212, %v213
        %v215 = vrot.slane %v214, 2
        %v216 = vadd.f32 %v214, %v215
        %v217 = vrot.slane %v216, 1
        %v218 = vadd.f32 %v216, %v217
        %v219 = vrcp.pop 255.0
        %v220 = vmul.f32 %v218, %v219
        %v221 = vrsqrt.pop %v220
        %v222 = vmul.f32 %v220, %v221
        %vm223 = vcmp.eq.f32.partialorder %v220, inf
        %v224 = vsel %vm223, %v220, %v222
        %vm225 = vcmp.eq.f32.partialorder %v220, 0.0
        %v226 = vand.u32 %v220, 2147483648
        %v227 = vsel %vm225, %v226, %v224
        %v228 = vadd.f32 %v227, 1e-05
        %v229 = vrcp.pop %v228
        %v230 = vmul.f32 %v202, %v229
        %v231 = vmul.f32 %v203, %v229
        %vm232 = vcmp.gt.f32.partialorder %v230, 5.0
        %vm233 = vcmp.gt.f32.partialorder %v231, 5.0
        %v234 = vsub.f32 %v230, 5.0
        %v235 = vsub.f32 %v231, 5.0
        %v236 = vmul.f32 %v234, 0.001
        %v237 = vmul.f32 %v235, 0.001
        %v238 = vadd.f32 %v236, 5.0
        %v239 = vadd.f32 %v237, 5.0
        %v240 = vsel %vm232, %v238, %v230
        %v241 = vsel %vm233, %v239, %v231
        %vm242 = vcmp.lt.f32.partialorder %v240, -3.0
        %vm243 = vcmp.lt.f32.partialorder %v241, -3.0
        %v244 = vadd.f32 %v240, 3.0
        %v245 = vadd.f32 %v241, 3.0
        %v246 = vmul.f32 %v244, 0.001
        %v247 = vmul.f32 %v245, 0.001
        %v248 = vsub.f32 %v246, 3.0
        %v249 = vsub.f32 %v247, 3.0
        %v250 = vsel %vm242, %v248, %v240
        %v251 = vsel %vm243, %v249, %v241
        %vm252 = vcmask 146432
        %253 = vst.msk [vmem:[#allocation2] sm:$0xff] %vm252, 0.0
        %254 = vst.msk [vmem:[#allocation2 + $0x8] sm:$0xff] %vm252, 0.0
        %vm255 = vcmask 140288
        %256 = vst.msk [vmem:[#allocation2 + $0x10] sm:$0x3] %vm255, 0.0
        %259 = vrot.lane.b32.xlu0 %v250, 1
        %v260 = vpop.permute.xlu0 %259
        %261 = vrot.lane.b32.xlu0 %v251, 1
        %v262 = vpop.permute.xlu0 %261
        %vm265 = vcmask 138248
        %266 = vst.msk [vmem:[#allocation2 + $0x1] sm:$0xff] %vm265, %v260
        %267 = vst.msk [vmem:[#allocation2 + $0x9] sm:$0xff] %vm265, %v262
        %v268 = vld [vmem:[#allocation2] sm:$0xff]
        %v269 = vld [vmem:[#allocation2 + $0x8] sm:$0xff]
        %s270 = sld [smem:[#allocation4]]
        %v271 = vstv %s270
        %v272 = vmul.f32 %v271, %v268
        %v273 = vmul.f32 %v271, %v269
        %v274 = vadd.f32 %v272, 0.0
        %v275 = vadd.f32 %v273, 0.0
        %s276 = sld [smem:[#allocation4 + $0x9]]
        %v277 = vstv %s276
        %v278 = vmul.f32 %v277, %v268
        %v279 = vmul.f32 %v277, %v269
        %v280 = vadd.f32 %v278, 0.0
        %v281 = vadd.f32 %v279, 0.0
        %s282 = sld [smem:[#allocation4 + $0x12]]
        %v283 = vstv %s282
        %v284 = vmul.f32 %v283, %v268
        %v285 = vmul.f32 %v283, %v269
        %v286 = vadd.f32 %v284, 0.0
        %v287 = vadd.f32 %v285, 0.0
        %s288 = sld [smem:[#allocation4 + $0x1b]]
        %v289 = vstv %s288
        %v290 = vmul.f32 %v289, %v268
        %v291 = vmul.f32 %v289, %v269
        %v292 = vadd.f32 %v290, 0.0
        %v293 = vadd.f32 %v291, 0.0
        %s294 = sld [smem:[#allocation4 + $0x1]]
        %v295 = vstv %s294
        %v296 = vmul.f32 %v295, %v268
        %v297 = vmul.f32 %v295, %v269
        %300 = vrot.lane.b32.xlu0 %v296, 127
        %v301 = vpop.permute.xlu0 %300
        %302 = vrot.lane.b32.xlu0 %v297, 127
        %v303 = vpop.permute.xlu0 %302
        %v306 = vadd.f32 %v274, %v301
        %v307 = vadd.f32 %v275, %v303
        %s308 = sld [smem:[#allocation4 + $0xa]]
        %v309 = vstv %s308
        %v310 = vmul.f32 %v309, %v268
        %v311 = vmul.f32 %v309, %v269
        %314 = vrot.lane.b32.xlu0 %v310, 127
        %v315 = vpop.permute.xlu0 %314
        %316 = vrot.lane.b32.xlu0 %v311, 127
        %v317 = vpop.permute.xlu0 %316
        %v320 = vadd.f32 %v280, %v315
        %v321 = vadd.f32 %v281, %v317
        %s322 = sld [smem:[#allocation4 + $0x13]]
        %v323 = vstv %s322
        %v324 = vmul.f32 %v323, %v268
        %v325 = vmul.f32 %v323, %v269
        %328 = vrot.lane.b32.xlu0 %v324, 127
        %v329 = vpop.permute.xlu0 %328
        %330 = vrot.lane.b32.xlu0 %v325, 127
        %v331 = vpop.permute.xlu0 %330
        %v334 = vadd.f32 %v286, %v329
        %v335 = vadd.f32 %v287, %v331
        %s336 = sld [smem:[#allocation4 + $0x1c]]
        %v337 = vstv %s336
        %v338 = vmul.f32 %v337, %v268
        %v339 = vmul.f32 %v337, %v269
        %342 = vrot.lane.b32.xlu0 %v338, 127
        %v343 = vpop.permute.xlu0 %342
        %344 = vrot.lane.b32.xlu0 %v339, 127
        %v345 = vpop.permute.xlu0 %344
        %v348 = vadd.f32 %v292, %v343
        %v349 = vadd.f32 %v293, %v345
        %s350 = sld [smem:[#allocation4 + $0x2]]
        %v351 = vstv %s350
        %v352 = vmul.f32 %v351, %v268
        %v353 = vmul.f32 %v351, %v269
        %356 = vrot.lane.b32.xlu0 %v352, 126
        %v357 = vpop.permute.xlu0 %356
        %358 = vrot.lane.b32.xlu0 %v353, 126
        %v359 = vpop.permute.xlu0 %358
        %v362 = vadd.f32 %v306, %v357
        %v363 = vadd.f32 %v307, %v359
        %s364 = sld [smem:[#allocation4 + $0xb]]
        %v365 = vstv %s364
        %v366 = vmul.f32 %v365, %v268
        %v367 = vmul.f32 %v365, %v269
        %370 = vrot.lane.b32.xlu0 %v366, 126
        %v371 = vpop.permute.xlu0 %370
        %372 = vrot.lane.b32.xlu0 %v367, 126
        %v373 = vpop.permute.xlu0 %372
        %v376 = vadd.f32 %v320, %v371
        %v377 = vadd.f32 %v321, %v373
        %s378 = sld [smem:[#allocation4 + $0x14]]
        %v379 = vstv %s378
        %v380 = vmul.f32 %v379, %v268
        %v381 = vmul.f32 %v379, %v269
        %384 = vrot.lane.b32.xlu0 %v380, 126
        %v385 = vpop.permute.xlu0 %384
        %386 = vrot.lane.b32.xlu0 %v381, 126
        %v387 = vpop.permute.xlu0 %386
        %v390 = vadd.f32 %v334, %v385
        %v391 = vadd.f32 %v335, %v387
        %s392 = sld [smem:[#allocation4 + $0x1d]]
        %v393 = vstv %s392
        %v394 = vmul.f32 %v393, %v268
        %v395 = vmul.f32 %v393, %v269
        %398 = vrot.lane.b32.xlu0 %v394, 126
        %v399 = vpop.permute.xlu0 %398
        %400 = vrot.lane.b32.xlu0 %v395, 126
        %v401 = vpop.permute.xlu0 %400
        %v404 = vadd.f32 %v348, %v399
        %v405 = vadd.f32 %v349, %v401
        %v406 = vld [vmem:[#allocation2 + $0x1] sm:$0xff]
        %v407 = vld [vmem:[#allocation2 + $0x9] sm:$0xff]
        %s408 = sld [smem:[#allocation4 + $0x3]]
        %v409 = vstv %s408
        %v410 = vmul.f32 %v409, %v406
        %v411 = vmul.f32 %v409, %v407
        %v412 = vadd.f32 %v362, %v410
        %v413 = vadd.f32 %v363, %v411
        %s414 = sld [smem:[#allocation4 + $0xc]]
        %v415 = vstv %s414
        %v416 = vmul.f32 %v415, %v406
        %v417 = vmul.f32 %v415, %v407
        %v418 = vadd.f32 %v376, %v416
        %v419 = vadd.f32 %v377, %v417
        %s420 = sld [smem:[#allocation4 + $0x15]]
        %v421 = vstv %s420
        %v422 = vmul.f32 %v421, %v406
        %v423 = vmul.f32 %v421, %v407
        %v424 = vadd.f32 %v390, %v422
        %v425 = vadd.f32 %v391, %v423
        %s426 = sld [smem:[#allocation4 + $0x1e]]
        %v427 = vstv %s426
        %v428 = vmul.f32 %v427, %v406
        %v429 = vmul.f32 %v427, %v407
        %v430 = vadd.f32 %v404, %v428
        %v431 = vadd.f32 %v405, %v429
        %s432 = sld [smem:[#allocation4 + $0x4]]
        %v433 = vstv %s432
        %v434 = vmul.f32 %v433, %v406
        %v435 = vmul.f32 %v433, %v407
        %438 = vrot.lane.b32.xlu0 %v434, 127
        %v439 = vpop.permute.xlu0 %438
        %440 = vrot.lane.b32.xlu0 %v435, 127
        %v441 = vpop.permute.xlu0 %440
        %v444 = vadd.f32 %v412, %v439
        %v445 = vadd.f32 %v413, %v441
        %s446 = sld [smem:[#allocation4 + $0xd]]
        %v447 = vstv %s446
        %v448 = vmul.f32 %v447, %v406
        %v449 = vmul.f32 %v447, %v407
        %452 = vrot.lane.b32.xlu0 %v448, 127
        %v453 = vpop.permute.xlu0 %452
        %454 = vrot.lane.b32.xlu0 %v449, 127
        %v455 = vpop.permute.xlu0 %454
        %v458 = vadd.f32 %v418, %v453
        %v459 = vadd.f32 %v419, %v455
        %s460 = sld [smem:[#allocation4 + $0x16]]
        %v461 = vstv %s460
        %v462 = vmul.f32 %v461, %v406
        %v463 = vmul.f32 %v461, %v407
        %466 = vrot.lane.b32.xlu0 %v462, 127
        %v467 = vpop.permute.xlu0 %466
        %468 = vrot.lane.b32.xlu0 %v463, 127
        %v469 = vpop.permute.xlu0 %468
        %v472 = vadd.f32 %v424, %v467
        %v473 = vadd.f32 %v425, %v469
        %s474 = sld [smem:[#allocation4 + $0x1f]]
        %v475 = vstv %s474
        %v476 = vmul.f32 %v475, %v406
        %v477 = vmul.f32 %v475, %v407
        %480 = vrot.lane.b32.xlu0 %v476, 127
        %v481 = vpop.permute.xlu0 %480
        %482 = vrot.lane.b32.xlu0 %v477, 127
        %v483 = vpop.permute.xlu0 %482
        %v486 = vadd.f32 %v430, %v481
        %v487 = vadd.f32 %v431, %v483
        %s488 = sld [smem:[#allocation4 + $0x5]]
        %v489 = vstv %s488
        %v490 = vmul.f32 %v489, %v406
        %v491 = vmul.f32 %v489, %v407
        %494 = vrot.lane.b32.xlu0 %v490, 126
        %v495 = vpop.permute.xlu0 %494
        %496 = vrot.lane.b32.xlu0 %v491, 126
        %v497 = vpop.permute.xlu0 %496
        %v500 = vadd.f32 %v444, %v495
        %v501 = vadd.f32 %v445, %v497
        %s502 = sld [smem:[#allocation4 + $0xe]]
        %v503 = vstv %s502
        %v504 = vmul.f32 %v503, %v406
        %v505 = vmul.f32 %v503, %v407
        %508 = vrot.lane.b32.xlu0 %v504, 126
        %v509 = vpop.permute.xlu0 %508
        %510 = vrot.lane.b32.xlu0 %v505, 126
        %v511 = vpop.permute.xlu0 %510
        %v514 = vadd.f32 %v458, %v509
        %v515 = vadd.f32 %v459, %v511
        %s516 = sld [smem:[#allocation4 + $0x17]]
        %v517 = vstv %s516
        %v518 = vmul.f32 %v517, %v406
        %v519 = vmul.f32 %v517, %v407
        %522 = vrot.lane.b32.xlu0 %v518, 126
        %v523 = vpop.permute.xlu0 %522
        %524 = vrot.lane.b32.xlu0 %v519, 126
        %v525 = vpop.permute.xlu0 %524
        %v528 = vadd.f32 %v472, %v523
        %v529 = vadd.f32 %v473, %v525
        %s530 = sld [smem:[#allocation4 + $0x20]]
        %v531 = vstv %s530
        %v532 = vmul.f32 %v531, %v406
        %v533 = vmul.f32 %v531, %v407
        %536 = vrot.lane.b32.xlu0 %v532, 126
        %v537 = vpop.permute.xlu0 %536
        %538 = vrot.lane.b32.xlu0 %v533, 126
        %v539 = vpop.permute.xlu0 %538
        %v542 = vadd.f32 %v486, %v537
        %v543 = vadd.f32 %v487, %v539
        %v544 = vld [vmem:[#allocation2 + $0x2] sm:$0xff]
        %v545 = vld [vmem:[#allocation2 + $0xa] sm:$0xff]
        %s546 = sld [smem:[#allocation4 + $0x6]]
        %v547 = vstv %s546
        %v548 = vmul.f32 %v547, %v544
        %v549 = vmul.f32 %v547, %v545
        %v550 = vadd.f32 %v500, %v548
        %v551 = vadd.f32 %v501, %v549
        %s552 = sld [smem:[#allocation4 + $0xf]]
        %v553 = vstv %s552
        %v554 = vmul.f32 %v553, %v544
        %v555 = vmul.f32 %v553, %v545
        %v556 = vadd.f32 %v514, %v554
        %v557 = vadd.f32 %v515, %v555
        %s558 = sld [smem:[#allocation4 + $0x18]]
        %v559 = vstv %s558
        %v560 = vmul.f32 %v559, %v544
        %v561 = vmul.f32 %v559, %v545
        %v562 = vadd.f32 %v528, %v560
        %v563 = vadd.f32 %v529, %v561
        %s564 = sld [smem:[#allocation4 + $0x21]]
        %v565 = vstv %s564
        %v566 = vmul.f32 %v565, %v544
        %v567 = vmul.f32 %v565, %v545
        %v568 = vadd.f32 %v542, %v566
        %v569 = vadd.f32 %v543, %v567
        %s570 = sld [smem:[#allocation4 + $0x7]]
        %v571 = vstv %s570
        %v572 = vmul.f32 %v571, %v544
        %v573 = vmul.f32 %v571, %v545
        %576 = vrot.lane.b32.xlu0 %v572, 127
        %v577 = vpop.permute.xlu0 %576
        %578 = vrot.lane.b32.xlu0 %v573, 127
        %v579 = vpop.permute.xlu0 %578
        %v582 = vadd.f32 %v550, %v577
        %v583 = vadd.f32 %v551, %v579
        %s584 = sld [smem:[#allocation4 + $0x10]]
        %v585 = vstv %s584
        %v586 = vmul.f32 %v585, %v544
        %v587 = vmul.f32 %v585, %v545
        %590 = vrot.lane.b32.xlu0 %v586, 127
        %v591 = vpop.permute.xlu0 %590
        %592 = vrot.lane.b32.xlu0 %v587, 127
        %v593 = vpop.permute.xlu0 %592
        %v596 = vadd.f32 %v556, %v591
        %v597 = vadd.f32 %v557, %v593
        %s598 = sld [smem:[#allocation4 + $0x19]]
        %v599 = vstv %s598
        %v600 = vmul.f32 %v599, %v544
        %v601 = vmul.f32 %v599, %v545
        %604 = vrot.lane.b32.xlu0 %v600, 127
        %v605 = vpop.permute.xlu0 %604
        %606 = vrot.lane.b32.xlu0 %v601, 127
        %v607 = vpop.permute.xlu0 %606
        %v610 = vadd.f32 %v562, %v605
        %v611 = vadd.f32 %v563, %v607
        %s612 = sld [smem:[#allocation4 + $0x22]]
        %v613 = vstv %s612
        %v614 = vmul.f32 %v613, %v544
        %v615 = vmul.f32 %v613, %v545
        %618 = vrot.lane.b32.xlu0 %v614, 127
        %v619 = vpop.permute.xlu0 %618
        %620 = vrot.lane.b32.xlu0 %v615, 127
        %v621 = vpop.permute.xlu0 %620
        %v624 = vadd.f32 %v568, %v619
        %v625 = vadd.f32 %v569, %v621
        %s626 = sld [smem:[#allocation4 + $0x8]]
        %v627 = vstv %s626
        %v628 = vmul.f32 %v627, %v544
        %v629 = vmul.f32 %v627, %v545
        %632 = vrot.lane.b32.xlu0 %v628, 126
        %v633 = vpop.permute.xlu0 %632
        %634 = vrot.lane.b32.xlu0 %v629, 126
        %v635 = vpop.permute.xlu0 %634
        %v638 = vadd.f32 %v582, %v633
        %v639 = vadd.f32 %v583, %v635
        %s640 = sld [smem:[#allocation4 + $0x11]]
        %v641 = vstv %s640
        %v642 = vmul.f32 %v641, %v544
        %v643 = vmul.f32 %v641, %v545
        %646 = vrot.lane.b32.xlu0 %v642, 126
        %v647 = vpop.permute.xlu0 %646
        %648 = vrot.lane.b32.xlu0 %v643, 126
        %v649 = vpop.permute.xlu0 %648
        %v652 = vadd.f32 %v596, %v647
        %v653 = vadd.f32 %v597, %v649
        %s654 = sld [smem:[#allocation4 + $0x1a]]
        %v655 = vstv %s654
        %v656 = vmul.f32 %v655, %v544
        %v657 = vmul.f32 %v655, %v545
        %660 = vrot.lane.b32.xlu0 %v656, 126
        %v661 = vpop.permute.xlu0 %660
        %662 = vrot.lane.b32.xlu0 %v657, 126
        %v663 = vpop.permute.xlu0 %662
        %v666 = vadd.f32 %v610, %v661
        %v667 = vadd.f32 %v611, %v663
        %s668 = sld [smem:[#allocation4 + $0x23]]
        %v669 = vstv %s668
        %v670 = vmul.f32 %v669, %v544
        %v671 = vmul.f32 %v669, %v545
        %674 = vrot.lane.b32.xlu0 %v670, 126
        %v675 = vpop.permute.xlu0 %674
        %676 = vrot.lane.b32.xlu0 %v671, 126
        %v677 = vpop.permute.xlu0 %676
        %v680 = vadd.f32 %v624, %v675
        %v681 = vadd.f32 %v625, %v677
        %s682 = sld [smem:[#allocation3]]
        %v683 = vstv %s682
        %v684 = vadd.f32 %v638, %v683
        %v685 = vadd.f32 %v639, %v683
        %v686 = vsub.f32 0.0, %v684
        %v687 = vsub.f32 0.0, %v685
        %v688 = vmul.f32 %v686, 1.442695
        %v689 = vpow.pop %v688
        %v690 = vmul.f32 %v687, 1.442695
        %v691 = vpow.pop %v690
        %v692 = vadd.f32 %v689, 1.0
        %v693 = vadd.f32 %v691, 1.0
        %v694 = vrcp.pop %v692
        %v695 = vrcp.pop %v693
        %v696 = vadd.f32 %v694, 0.0
        %v697 = vadd.f32 %v695, 0.0
        %v698 = vadd.f32 %v652, %v683
        %v699 = vadd.f32 %v653, %v683
        %v700 = vsub.f32 0.0, %v698
        %v701 = vsub.f32 0.0, %v699
        %v702 = vmul.f32 %v700, 1.442695
        %v703 = vpow.pop %v702
        %v704 = vmul.f32 %v701, 1.442695
        %v705 = vpow.pop %v704
        %v706 = vadd.f32 %v703, 1.0
        %v707 = vadd.f32 %v705, 1.0
        %v708 = vrcp.pop %v706
        %v709 = vrcp.pop %v707
        %v710 = vadd.f32 %v696, %v708
        %v711 = vadd.f32 %v697, %v709
        %v712 = vadd.f32 %v666, %v683
        %v713 = vadd.f32 %v667, %v683
        %v714 = vsub.f32 0.0, %v712
        %v715 = vsub.f32 0.0, %v713
        %v716 = vmul.f32 %v714, 1.442695
        %v717 = vpow.pop %v716
        %v718 = vmul.f32 %v715, 1.442695
        %v719 = vpow.pop %v718
        %v720 = vadd.f32 %v717, 1.0
        %v721 = vadd.f32 %v719, 1.0
        %v722 = vrcp.pop %v720
        %v723 = vrcp.pop %v721
        %v724 = vadd.f32 %v710, %v722
        %v725 = vadd.f32 %v711, %v723
        %v726 = vadd.f32 %v680, %v683
        %v727 = vadd.f32 %v681, %v683
        %v728 = vsub.f32 0.0, %v726
        %v729 = vsub.f32 0.0, %v727
        %v730 = vmul.f32 %v728, 1.442695
        %v731 = vpow.pop %v730
        %v732 = vmul.f32 %v729, 1.442695
        %v733 = vpow.pop %v732
        %v734 = vadd.f32 %v731, 1.0
        %v735 = vadd.f32 %v733, 1.0
        %v736 = vrcp.pop %v734
        %v737 = vrcp.pop %v735
        %v738 = vadd.f32 %v724, %v736
        %v739 = vadd.f32 %v725, %v737
        %v740 = vmul.f32 %v738, 0.25
        %v741 = vmul.f32 %v739, 0.25
        %742 = vst.msk [vmem:[%s178] sm:$0xff] %vm186, %v740
        %743 = vst.msk [vmem:[%s178 + $0x8] sm:$0xff] %vm186, %v741
        %s744 = sand.u32 %s95, 1
        %s745 = scalar_lea.sflag [#allocation5], %s744
        %s746 = sand.u32 %s95, 1
        %s747 = smul.addr %s746, 16
        %s748 = scalar_lea.vmem [#allocation7], %s747
        // Predicated region
        $region37: #{custom_model_forward.1} parent=31 // pred_check
          %p749 = pneg %p105
        $region38: #{custom_model_forward.1} parent=31 // pred_check_branch
          %751 = sbr.rel (%p749) target = $region40
        $region39: #{custom_model_forward.1} parent=31 // pred_region
          %s753 = ssub.s32 256, 256
          %754 = vsyncadd %s745, %s753
          %s755 = smul.addr %s19, 2
          %s756 = smul.addr %s755, 128
          %s757 = scalar_lea.hbm %s3, %s756
          %s758 = sshll.u32 %s748, 4
          %s759 = int_to_ptr.vmem [resolvable:$true] %s758
          %764 = dma.vmem_to_hbm [thread:$0]  %s759, 256, %s757, %s745, 128, 128, 8
        $region40: #{custom_model_forward.1} parent=31 // pred_fallthru
          _
      $region32: #{custom_model_forward.1} parent=5 // pred_fallthru
        _
      %p765 = scmp.le.s32.totalorder 2, %s14
      // Predicated region
      $region41: #{custom_model_forward.1} parent=5 // pred_check
        %p766 = pneg %p765
      $region42: #{custom_model_forward.1} parent=5 // pred_check_branch
        %768 = sbr.rel (%p766) target = $region44
      $region43: #{custom_model_forward.1} parent=5 // pred_region
        %s769 = ssub.s32 %s14, 2
        // Predicated region
        $region45: #{custom_model_forward.1} parent=43 // pred_check
          %p770 = pneg %p111
        $region46: #{custom_model_forward.1} parent=43 // pred_check_branch
          %772 = sbr.rel (%p770) target = $region48
        $region47: #{custom_model_forward.1} parent=43 // pred_region
          %s773 = sand.u32 %s96, 1
          %s774 = scalar_lea.sflag [#allocation5], %s773
          %s775 = sand.u32 %s96, 1
          %s776 = smul.addr %s775, 16
          %s777 = scalar_lea.vmem [#allocation7], %s776
          %778 = dma.done %s774, 256
        $region48: #{custom_model_forward.1} parent=43 // pred_fallthru
          _
      $region44: #{custom_model_forward.1} parent=5 // pred_fallthru
        _
    $region6: #{custom_model_forward.1} parent=1 // loop_footer
      %s18 = sadd.s32 1, %s14
    $region7: #{custom_model_forward.1} parent=1 // loop_footer_branch
      %13 = sbr.rel target = $region3
    $region8: #{custom_model_forward.1} parent=1 // loop_exit
      _
    %779 = vsyncpa [#allocation5], 1
    %s780 = scalar_lea.sflag [#allocation5], 1
    %781 = vsyncpa %s780, 1
    %782 = vsyncpa [#allocation6], 1
    %s783 = scalar_lea.sflag [#allocation6], 1
    %784 = vsyncpa %s783, 1

</llo_original>
